<compile_context>
chip_gen: v7x
topology: tpu7x:2x2x1
jax: 0.10.0
libtpu: 0.0.40
codegen_flags: <defaults>
</compile_context>

<pallas_src>
import functools

import jax
import jax.numpy as jnp
from jax.experimental import pallas as pl
from jax.experimental.pallas import tpu as pltpu


def _round_up(x, m):
    return ((x + m - 1) // m) * m


# ----------------------------------------------------------------------------
# Pallas kernels (operate on (BT, C, TL) blocks; lane axis = time)
# ----------------------------------------------------------------------------
def _k1_block_kernel_ds(x_ref, w1d_ref, b1_ref, bd_ref, w2_ref, b2_ref, o_ref,
                        *, c1_pad):
    """Variant with a downsample; conv1 and downsample matmuls are fused.

    x_ref:   (BT, C_in, TL)
    w1d_ref: (c1_pad + C_out, C_in)  rows [0:c1_pad] = conv1 (zero-padded),
                                     rows [c1_pad:]  = downsample
    b1_ref:  (c1_pad, 1)  f32 (padded rows are 0)
    bd_ref:  (C_out, 1)   f32
    w2_ref:  (C_out, c1_pad)   (zero-padded columns)
    b2_ref:  (C_out, 1)   f32
    o_ref:   (BT, C_out, TL)
    """
    cdt = w1d_ref.dtype                       # compute dtype (MXU operands)
    w1d = w1d_ref[...]
    w2 = w2_ref[...]
    b1 = b1_ref[...]
    bd = bd_ref[...]
    b2 = b2_ref[...]
    bt = x_ref.shape[0]
    for b in range(bt):                       # static unroll, BT is small
        x = x_ref[b].astype(cdt)                                  # (C_in, TL)
        # Fused conv1 + downsample: one MXU push of x.
        hd = jnp.dot(w1d, x, preferred_element_type=jnp.float32)
        # conv1 + bias + relu (dropout in eval mode == identity); the split at
        # c1_pad is sublane-tile aligned.
        h1 = jnp.maximum(hd[:c1_pad, :] + b1, 0.0)
        # downsample residual + bias
        res = hd[c1_pad:, :] + bd
        # conv2 + bias + relu
        h2 = jnp.dot(w2, h1.astype(cdt), preferred_element_type=jnp.float32)
        h2 = jnp.maximum(h2 + b2, 0.0)
        # final relu(out + res)
        o_ref[b] = jnp.maximum(h2 + res, 0.0).astype(o_ref.dtype)


def _k1_block_kernel_identity(x_ref, w1_ref, b1_ref, w2_ref, b2_ref, o_ref):
    """Variant without downsample (n_inputs == n_outputs): res = x."""
    cdt = w1_ref.dtype
    w1 = w1_ref[...]
    w2 = w2_ref[...]
    b1 = b1_ref[...]
    b2 = b2_ref[...]
    bt = x_ref.shape[0]
    for b in range(bt):
        x = x_ref[b].astype(cdt)
        h1 = jnp.dot(w1, x, preferred_element_type=jnp.float32)
        h1 = jnp.maximum(h1 + b1, 0.0)
        h2 = jnp.dot(w2, h1.astype(cdt), preferred_element_type=jnp.float32)
        h2 = jnp.maximum(h2 + b2, 0.0)
        # Re-read the residual at the point of use: short live range, avoids
        # holding an f32 copy of the tile across both matmuls.
        res = x_ref[b].astype(jnp.float32)
        o_ref[b] = jnp.maximum(h2 + res, 0.0).astype(o_ref.dtype)


# ----------------------------------------------------------------------------
# Parameter preparation (hoisted out of the forward call)
# ----------------------------------------------------------------------------
def _weight_norm(v, g):
    """PyTorch weight_norm (dim=0): w[o] = g[o] * v[o] / ||v[o]||_2.

    No epsilon, mirroring PyTorch; an all-zero filter row yields NaN there too.
    """
    norm = jnp.sqrt(jnp.sum(v * v, axis=tuple(range(1, v.ndim)), keepdims=True))
    return g * v / norm


def prepare_k1_block_params(params, *, compute_dtype=jnp.bfloat16):
    """Precompute kernel-ready weights ONCE (weight_norm, fusion, padding, casts)."""
    w1 = _weight_norm(params["conv1_v"], params["conv1_g"])[:, :, 0]  # (C_out, C_in)
    w2 = _weight_norm(params["conv2_v"], params["conv2_g"])[:, :, 0]  # (C_out, C_out)
    c_out, c_in = w1.shape
    has_down = "down_w" in params
    b1 = params["conv1_b"].reshape(c_out, 1).astype(jnp.float32)
    b2 = params["conv2_b"].reshape(c_out, 1).astype(jnp.float32)
    prep = {"c_in": int(c_in), "c_out": int(c_out), "has_down": has_down}
    if has_down:
        # Pad the conv1 section up to a multiple of 8 rows so the in-kernel
        # sublane split of the fused matmul result is tile-aligned.
        c1_pad = _round_up(c_out, 8)
        pad = c1_pad - c_out
        w1_p = jnp.pad(w1, ((0, pad), (0, 0)))
        b1_p = jnp.pad(b1, ((0, pad), (0, 0)))
        w2_p = jnp.pad(w2, ((0, 0), (0, pad)))        # padded h1 rows are 0
        w1d = jnp.concatenate([w1_p, params["down_w"][:, :, 0]], axis=0)
        prep.update(
            c1_pad=int(c1_pad),
            w1d=w1d.astype(compute_dtype),
            b1=b1_p,
            bd=params["down_b"].reshape(c_out, 1).astype(jnp.float32),
            w2=w2_p.astype(compute_dtype),
            b2=b2,
        )
    else:
        prep.update(
            w1=w1.astype(compute_dtype),
            b1=b1,
            w2=w2.astype(compute_dtype),
            b2=b2,
        )
    return prep


# ----------------------------------------------------------------------------
# Chip-aware tiling
# ----------------------------------------------------------------------------
def _vmem_budget():
    """Chip-aware (pipeline byte budget, vmem_limit_bytes)."""
    vmem_cap = None
    try:
        info = pltpu.get_tpu_info()
        vmem_cap = getattr(info, "vmem_capacity_bytes", None)
    except Exception:
        vmem_cap = None
    if vmem_cap is not None and vmem_cap >= (96 << 20):
        # v5e / v6e: 128 MiB physical VMEM -> big tiles, long DMA bursts.
        return 40 << 20, 64 << 20
    # v7x (64 MiB physical / 32 MiB scoped) or unknown: stay conservative.
    return 16 << 20, 32 << 20


def _choose_tiles(n, length, c_in, c_out, f32_rows, x_bytes, out_bytes,
                  weight_bytes, budget):
    """Pick (batch_tile, l_tile).

    Budget accounts for double-buffered x/out tiles, the double-buffered
    resident weights, and (roughly) the f32 intermediates.
    """
    act_budget = max(budget - 2 * weight_bytes, 1 << 20)
    per_lane = (2 * (c_in * x_bytes + c_out * out_bytes)   # pipelined x / out
                + 4 * f32_rows                             # f32 intermediates
                + 2 * c_in)                                # compute-dtype x cast
    if length < 128:
        # Tiny time axis: take the whole axis and pack several batch elements
        # per grid step to amortize per-step overhead and weight reloads.
        per_batch = max(per_lane * length, 1)
        bt = max(1, min(n, 8, act_budget // per_batch))
        return int(bt), int(length)
    max_tl = max(act_budget // per_lane, 128)
    if length <= max_tl:
        return 1, int(length)                    # whole time axis per step
    return 1, int((max_tl // 128) * 128)         # lane-aligned; partial last block OK


# ----------------------------------------------------------------------------
# Forward wrapper
# ----------------------------------------------------------------------------
def k1_temporal_block(x_ncl, prep):
    """Run the K1TemporalBlock forward pass.

    Args:
      x_ncl: (N, C_in, L) input (PyTorch NCL convention). Pass bf16 to halve
        HBM traffic; any float dtype is cast in-kernel for the MXU.
      prep: output of prepare_k1_block_params (precomputed once).

    Returns:
      (N, C_out, L) output, same dtype as x_ncl.
    """
    n, c_in, length = x_ncl.shape
    c_out = prep["c_out"]
    assert c_in == prep["c_in"], (c_in, prep["c_in"])
    has_down = prep["has_down"]

    x_bytes = jnp.dtype(x_ncl.dtype).itemsize
    out_bytes = x_bytes

    if has_down:
        c1_pad = prep["c1_pad"]
        weight_arrays = (prep["w1d"], prep["b1"], prep["bd"], prep["w2"], prep["b2"])
        f32_rows = 2 * c1_pad + 3 * c_out      # hd, h1, h2, res
    else:
        weight_arrays = (prep["w1"], prep["b1"], prep["w2"], prep["b2"])
        f32_rows = 3 * c_out + c_in            # h1, h2, res
    weight_bytes = sum(int(a.size) * jnp.dtype(a.dtype).itemsize
                       for a in weight_arrays)

    budget, vmem_limit = _vmem_budget()
    bt, tl = _choose_tiles(n, length, c_in, c_out, f32_rows,
                           x_bytes, out_bytes, weight_bytes, budget)

    # L-tile axis first so megacore (v7x) has parallel work even when N is 1.
    grid = (pl.cdiv(length, tl), pl.cdiv(n, bt))

    x_spec = pl.BlockSpec((bt, c_in, tl), lambda l, b: (b, 0, l))
    o_spec = pl.BlockSpec((bt, c_out, tl), lambda l, b: (b, 0, l))
    resident = lambda shape: pl.BlockSpec(shape, lambda l, b: (0, 0))

    compiler_params = pltpu.CompilerParams(
        dimension_semantics=("parallel", "parallel"),
        vmem_limit_bytes=int(vmem_limit),
    )
    out_shape = jax.ShapeDtypeStruct((n, c_out, length), x_ncl.dtype)

    if has_down:
        rows_fused = prep["w1d"].shape[0]
        return pl.pallas_call(
            functools.partial(_k1_block_kernel_ds, c1_pad=c1_pad),
            out_shape=out_shape,
            grid_spec=pl.GridSpec(
                grid=grid,
                in_specs=[
                    x_spec,                                # x
                    resident((rows_fused, c_in)),          # [w1_pad; wd]
                    resident((c1_pad, 1)),                 # b1 (padded)
                    resident((c_out, 1)),                  # bd
                    resident((c_out, c1_pad)),             # w2 (padded cols)
                    resident((c_out, 1)),                  # b2
                ],
                out_specs=o_spec,
            ),
            compiler_params=compiler_params,
        )(x_ncl, prep["w1d"], prep["b1"], prep["bd"], prep["w2"], prep["b2"])
    else:
        return pl.pallas_call(
            _k1_block_kernel_identity,
            out_shape=out_shape,
            grid_spec=pl.GridSpec(
                grid=grid,
                in_specs=[
                    x_spec,
                    resident((c_out, c_in)),
                    resident((c_out, 1)),
                    resident((c_out, c_out)),
                    resident((c_out, 1)),
                ],
                out_specs=o_spec,
            ),
            compiler_params=compiler_params,
        )(x_ncl, prep["w1"], prep["b1"], prep["w2"], prep["b2"])


# ----------------------------------------------------------------------------
# Deterministic parameter initialization (synthetic, mirrors module shapes)
# ----------------------------------------------------------------------------
def init_params(key, n_inputs, n_outputs):
    ks = jax.random.split(key, 6)
    # weight_norm stores v and g; default g init == per-out-channel ||v||.
    conv1_v = 0.01 * jax.random.normal(ks[0], (n_outputs, n_inputs, 1),
                                       jnp.float32)
    conv1_g = jnp.sqrt(jnp.sum(conv1_v**2, axis=(1, 2), keepdims=True))
    conv2_v = 0.01 * jax.random.normal(ks[1], (n_outputs, n_outputs, 1),
                                       jnp.float32)
    conv2_g = jnp.sqrt(jnp.sum(conv2_v**2, axis=(1, 2), keepdims=True))
    params = {
        "conv1_v": conv1_v,
        "conv1_g": conv1_g,
        "conv1_b": 0.1 * jax.random.normal(ks[2], (n_outputs,), jnp.float32),
        "conv2_v": conv2_v,
        "conv2_g": conv2_g,
        "conv2_b": 0.1 * jax.random.normal(ks[3], (n_outputs,), jnp.float32),
    }
    if n_inputs != n_outputs:
        params["down_w"] = 0.01 * jax.random.normal(
            ks[4], (n_outputs, n_inputs, 1), jnp.float32)
        params["down_b"] = 0.1 * jax.random.normal(ks[5], (n_outputs,),
                                                   jnp.float32)
    return params


# Pure-JAX f32 reference for correctness checking.
def _reference(x_ncl_f32, params):
    w1 = _weight_norm(params["conv1_v"], params["conv1_g"])[:, :, 0]
    w2 = _weight_norm(params["conv2_v"], params["conv2_g"])[:, :, 0]
    h1 = jnp.maximum(
        jnp.einsum("oc,ncl->nol", w1, x_ncl_f32)
        + params["conv1_b"][None, :, None], 0.0)
    h2 = jnp.maximum(
        jnp.einsum("oc,ncl->nol", w2, h1)
        + params["conv2_b"][None, :, None], 0.0)
    if "down_w" in params:
        res = (jnp.einsum("oc,ncl->nol", params["down_w"][:, :, 0], x_ncl_f32)
               + params["down_b"][None, :, None])
    else:
        res = x_ncl_f32
    return jnp.maximum(h2 + res, 0.0)
    # TODO(synk): nn.Dropout is identity at inference; training-mode dropout
    # masks are not implemented.


def _check(name, x_f32, params):
    x_bf16 = x_f32.astype(jnp.bfloat16)          # bf16 through HBM
    prep = prepare_k1_block_params(params)       # hoisted weight preprocessing
    out = jax.block_until_ready(k1_temporal_block(x_bf16, prep))
    ref = _reference(x_bf16.astype(jnp.float32), params)
    assert out.shape == ref.shape, (name, out.shape, ref.shape)
    err = float(jnp.max(jnp.abs(out.astype(jnp.float32) - ref)))
    assert jnp.allclose(out.astype(jnp.float32), ref, atol=2e-2, rtol=2e-2), (
        f"mismatch vs reference ({name}): max abs err = {err}")


if __name__ == "__main__":
    key = jax.random.PRNGKey(0)
    k_x1, k_p1, k_x2, k_p2, k_x3, k_p3 = jax.random.split(key, 6)

    # Case 1: n_inputs != n_outputs (non-multiple-of-8 c_out) -> fused
    # conv1+downsample path with sublane padding, tiny-L batch packing.
    x1 = jax.random.normal(k_x1, (2, 4, 16), jnp.float32)
    params1 = init_params(k_p1, 4, 12)
    _check("downsample path", x1, params1)

    # Case 2: n_inputs == n_outputs -> identity residual path, tiny L.
    x2 = jax.random.normal(k_x2, (2, 8, 16), jnp.float32)
    params2 = init_params(k_p2, 8, 8)
    _check("identity path", x2, params2)

    # Case 3: longer time axis (L >= 128) -> lane-tiled main path.
    x3 = jax.random.normal(k_x3, (2, 16, 256), jnp.float32)
    params3 = init_params(k_p3, 16, 16)
    _check("long-L identity path", x3, params3)

    print("KERNEL_OK")
</pallas_src>

<mosaic_0001>
module attributes {stable_mosaic.version = 11 : i64} {
  func.func @_k1_block_kernel_ds(%arg0: i32, %arg1: i32, %arg2: memref<2x4x16xbf16, #tpu.memory_space<vmem>>, %arg3: memref<28x4xbf16, #tpu.memory_space<vmem>>, %arg4: memref<16x1xf32, #tpu.memory_space<vmem>>, %arg5: memref<12x1xf32, #tpu.memory_space<vmem>>, %arg6: memref<12x16xbf16, #tpu.memory_space<vmem>>, %arg7: memref<12x1xf32, #tpu.memory_space<vmem>>, %arg8: memref<2x12x16xbf16, #tpu.memory_space<vmem>>) attributes {dimension_semantics = [#tpu.dimension_semantics<parallel>, #tpu.dimension_semantics<parallel>], iteration_bounds = array<i64: 1, 1>, scalar_prefetch = 0 : i64, scratch_operands = 0 : i64, tpu.core_type = #tpu.core_type<tc>, window_params = [{transform_indices = @transform_0, window_bounds = array<i64: 2, 4, 16>}, {pipeline_mode = #tpu.pipeline_mode<synchronous>, transform_indices = @transform_1, window_bounds = array<i64: 28, 4>}, {pipeline_mode = #tpu.pipeline_mode<synchronous>, transform_indices = @transform_2, window_bounds = array<i64: 16, 1>}, {pipeline_mode = #tpu.pipeline_mode<synchronous>, transform_indices = @transform_3, window_bounds = array<i64: 12, 1>}, {pipeline_mode = #tpu.pipeline_mode<synchronous>, transform_indices = @transform_4, window_bounds = array<i64: 12, 16>}, {pipeline_mode = #tpu.pipeline_mode<synchronous>, transform_indices = @transform_5, window_bounds = array<i64: 12, 1>}, {transform_indices = @transform_6, window_bounds = array<i64: 2, 12, 16>}]} {
    %c0 = arith.constant 0 : index
    %c0_0 = arith.constant 0 : index
    %0 = vector.load %arg3[%c0, %c0_0] : memref<28x4xbf16, #tpu.memory_space<vmem>>, vector<28x4xbf16>
    %c0_1 = arith.constant 0 : index
    %c0_2 = arith.constant 0 : index
    %1 = vector.load %arg6[%c0_1, %c0_2] : memref<12x16xbf16, #tpu.memory_space<vmem>>, vector<12x16xbf16>
    %c0_3 = arith.constant 0 : index
    %c0_4 = arith.constant 0 : index
    %2 = vector.load %arg4[%c0_3, %c0_4] : memref<16x1xf32, #tpu.memory_space<vmem>>, vector<16x1xf32>
    %c0_5 = arith.constant 0 : index
    %c0_6 = arith.constant 0 : index
    %3 = vector.load %arg5[%c0_5, %c0_6] : memref<12x1xf32, #tpu.memory_space<vmem>>, vector<12x1xf32>
    %c0_7 = arith.constant 0 : index
    %c0_8 = arith.constant 0 : index
    %4 = vector.load %arg7[%c0_7, %c0_8] : memref<12x1xf32, #tpu.memory_space<vmem>>, vector<12x1xf32>
    %c0_9 = arith.constant 0 : index
    %c0_10 = arith.constant 0 : index
    %c0_11 = arith.constant 0 : index
    %5 = vector.load %arg2[%c0_9, %c0_10, %c0_11] : memref<2x4x16xbf16, #tpu.memory_space<vmem>>, vector<1x4x16xbf16>
    %6 = vector.shape_cast %5 : vector<1x4x16xbf16> to vector<4x16xbf16>
    %cst = arith.constant dense<0.000000e+00> : vector<28x16xf32>
    %7 = tpu.matmul %0, %6, %cst {dimension_numbers = #tpu.dot_dimension_numbers<[1], [0], [0], [1], [0, 0, 1, 1], [], []>} : vector<28x4xbf16>, vector<4x16xbf16>, vector<28x16xf32> -> vector<28x16xf32>
    %8 = vector.extract_strided_slice %7 {offsets = [0, 0], sizes = [16, 16], strides = [1, 1]} : vector<28x16xf32> to vector<16x16xf32>
    %9 = vector.broadcast %2 : vector<16x1xf32> to vector<16x16xf32>
    %10 = arith.addf %8, %9 : vector<16x16xf32>
    %cst_12 = arith.constant 0.000000e+00 : f32
    %11 = vector.broadcast %cst_12 : f32 to vector<16x16xf32>
    %12 = arith.maximumf %10, %11 : vector<16x16xf32>
    %13 = vector.extract_strided_slice %7 {offsets = [16, 0], sizes = [12, 16], strides = [1, 1]} : vector<28x16xf32> to vector<12x16xf32>
    %14 = vector.broadcast %3 : vector<12x1xf32> to vector<12x16xf32>
    %15 = arith.addf %13, %14 : vector<12x16xf32>
    %16 = arith.truncf %12 : vector<16x16xf32> to vector<16x16xbf16>
    %cst_13 = arith.constant dense<0.000000e+00> : vector<12x16xf32>
    %17 = tpu.matmul %1, %16, %cst_13 {dimension_numbers = #tpu.dot_dimension_numbers<[1], [0], [0], [1], [0, 0, 1, 1], [], []>} : vector<12x16xbf16>, vector<16x16xbf16>, vector<12x16xf32> -> vector<12x16xf32>
    %18 = vector.broadcast %4 : vector<12x1xf32> to vector<12x16xf32>
    %19 = arith.addf %17, %18 : vector<12x16xf32>
    %cst_14 = arith.constant 0.000000e+00 : f32
    %20 = vector.broadcast %cst_14 : f32 to vector<12x16xf32>
    %21 = arith.maximumf %19, %20 : vector<12x16xf32>
    %22 = arith.addf %21, %15 : vector<12x16xf32>
    %cst_15 = arith.constant 0.000000e+00 : f32
    %23 = vector.broadcast %cst_15 : f32 to vector<12x16xf32>
    %24 = arith.maximumf %22, %23 : vector<12x16xf32>
    %25 = arith.truncf %24 : vector<12x16xf32> to vector<12x16xbf16>
    %c0_16 = arith.constant 0 : index
    %c0_17 = arith.constant 0 : index
    %c0_18 = arith.constant 0 : index
    %26 = vector.load %arg8[%c0_16, %c0_17, %c0_18] : memref<2x12x16xbf16, #tpu.memory_space<vmem>>, vector<1x12x16xbf16>
    %27 = vector.shape_cast %26 : vector<1x12x16xbf16> to vector<12x16xbf16>
    %28 = vector.shape_cast %25 : vector<12x16xbf16> to vector<1x12x16xbf16>
    tpu.vector_store %arg8[%c0_16, %c0_17, %c0_18], %28 {strides = array<i32>} : memref<2x12x16xbf16, #tpu.memory_space<vmem>>, vector<1x12x16xbf16>,
    %c1 = arith.constant 1 : index
    %c0_19 = arith.constant 0 : index
    %c0_20 = arith.constant 0 : index
    %29 = vector.load %arg2[%c1, %c0_19, %c0_20] : memref<2x4x16xbf16, #tpu.memory_space<vmem>>, vector<1x4x16xbf16>
    %30 = vector.shape_cast %29 : vector<1x4x16xbf16> to vector<4x16xbf16>
    %cst_21 = arith.constant dense<0.000000e+00> : vector<28x16xf32>
    %31 = tpu.matmul %0, %30, %cst_21 {dimension_numbers = #tpu.dot_dimension_numbers<[1], [0], [0], [1], [0, 0, 1, 1], [], []>} : vector<28x4xbf16>, vector<4x16xbf16>, vector<28x16xf32> -> vector<28x16xf32>
    %32 = vector.extract_strided_slice %31 {offsets = [0, 0], sizes = [16, 16], strides = [1, 1]} : vector<28x16xf32> to vector<16x16xf32>
    %33 = vector.broadcast %2 : vector<16x1xf32> to vector<16x16xf32>
    %34 = arith.addf %32, %33 : vector<16x16xf32>
    %cst_22 = arith.constant 0.000000e+00 : f32
    %35 = vector.broadcast %cst_22 : f32 to vector<16x16xf32>
    %36 = arith.maximumf %34, %35 : vector<16x16xf32>
    %37 = vector.extract_strided_slice %31 {offsets = [16, 0], sizes = [12, 16], strides = [1, 1]} : vector<28x16xf32> to vector<12x16xf32>
    %38 = vector.broadcast %3 : vector<12x1xf32> to vector<12x16xf32>
    %39 = arith.addf %37, %38 : vector<12x16xf32>
    %40 = arith.truncf %36 : vector<16x16xf32> to vector<16x16xbf16>
    %cst_23 = arith.constant dense<0.000000e+00> : vector<12x16xf32>
    %41 = tpu.matmul %1, %40, %cst_23 {dimension_numbers = #tpu.dot_dimension_numbers<[1], [0], [0], [1], [0, 0, 1, 1], [], []>} : vector<12x16xbf16>, vector<16x16xbf16>, vector<12x16xf32> -> vector<12x16xf32>
    %42 = vector.broadcast %4 : vector<12x1xf32> to vector<12x16xf32>
    %43 = arith.addf %41, %42 : vector<12x16xf32>
    %cst_24 = arith.constant 0.000000e+00 : f32
    %44 = vector.broadcast %cst_24 : f32 to vector<12x16xf32>
    %45 = arith.maximumf %43, %44 : vector<12x16xf32>
    %46 = arith.addf %45, %39 : vector<12x16xf32>
    %cst_25 = arith.constant 0.000000e+00 : f32
    %47 = vector.broadcast %cst_25 : f32 to vector<12x16xf32>
    %48 = arith.maximumf %46, %47 : vector<12x16xf32>
    %49 = arith.truncf %48 : vector<12x16xf32> to vector<12x16xbf16>
    %c1_26 = arith.constant 1 : index
    %c0_27 = arith.constant 0 : index
    %c0_28 = arith.constant 0 : index
    %50 = vector.load %arg8[%c1_26, %c0_27, %c0_28] : memref<2x12x16xbf16, #tpu.memory_space<vmem>>, vector<1x12x16xbf16>
    %51 = vector.shape_cast %50 : vector<1x12x16xbf16> to vector<12x16xbf16>
    %52 = vector.shape_cast %49 : vector<12x16xbf16> to vector<1x12x16xbf16>
    tpu.vector_store %arg8[%c1_26, %c0_27, %c0_28], %52 {strides = array<i32>} : memref<2x12x16xbf16, #tpu.memory_space<vmem>>, vector<1x12x16xbf16>,
    return
  }
  func.func @transform_0(%arg0: i32, %arg1: i32) -> (i32, i32, i32) {
    %c0_i32 = arith.constant 0 : i32
    %c0_i32_0 = arith.constant 0 : i32
    return %arg1, %c0_i32, %arg0 : i32, i32, i32
  }
  func.func @transform_1(%arg0: i32, %arg1: i32) -> (i32, i32) {
    %c0_i32 = arith.constant 0 : i32
    %c0_i32_0 = arith.constant 0 : i32
    %c0_i32_1 = arith.constant 0 : i32
    return %c0_i32, %c0_i32_0 : i32, i32
  }
  func.func @transform_2(%arg0: i32, %arg1: i32) -> (i32, i32) {
    %c0_i32 = arith.constant 0 : i32
    %c0_i32_0 = arith.constant 0 : i32
    %c0_i32_1 = arith.constant 0 : i32
    return %c0_i32, %c0_i32_0 : i32, i32
  }
  func.func @transform_3(%arg0: i32, %arg1: i32) -> (i32, i32) {
    %c0_i32 = arith.constant 0 : i32
    %c0_i32_0 = arith.constant 0 : i32
    %c0_i32_1 = arith.constant 0 : i32
    return %c0_i32, %c0_i32_0 : i32, i32
  }
  func.func @transform_4(%arg0: i32, %arg1: i32) -> (i32, i32) {
    %c0_i32 = arith.constant 0 : i32
    %c0_i32_0 = arith.constant 0 : i32
    %c0_i32_1 = arith.constant 0 : i32
    return %c0_i32, %c0_i32_0 : i32, i32
  }
  func.func @transform_5(%arg0: i32, %arg1: i32) -> (i32, i32) {
    %c0_i32 = arith.constant 0 : i32
    %c0_i32_0 = arith.constant 0 : i32
    %c0_i32_1 = arith.constant 0 : i32
    return %c0_i32, %c0_i32_0 : i32, i32
  }
  func.func @transform_6(%arg0: i32, %arg1: i32) -> (i32, i32, i32) {
    %c0_i32 = arith.constant 0 : i32
    %c0_i32_0 = arith.constant 0 : i32
    return %arg1, %c0_i32, %arg0 : i32, i32, i32
  }
}

</mosaic_0001>

<llo_original>
// kernel: tpu_custom_call.1
$region0: #{tpu_custom_call.1}
  #allocation0 [shape = 'u32[]', space=smem, size = 0x4, offset = 0x4, fixed_abs, tag = 'smem constant byte address 0x4 - core index']
  #allocation1 [shape = 'u32[144,128]{1,0:T(1,128)}', space=vmem, size = 0x12000, scoped, tag = 'internal scratch']
  %s0 = inlined_call_operand.vmem [shape: bf16[2,4,16], index: 0, kind: input, shape index: {}]
  %s1 = inlined_call_operand.vmem [shape: bf16[28,4], index: 1, kind: input, shape index: {}]
  %s2 = inlined_call_operand.vmem [shape: f32[16,1], index: 2, kind: input, shape index: {}]
  %s3 = inlined_call_operand.vmem [shape: f32[12,1], index: 3, kind: input, shape index: {}]
  %s4 = inlined_call_operand.vmem [shape: bf16[12,16], index: 4, kind: input, shape index: {}]
  %s5 = inlined_call_operand.vmem [shape: f32[12,1], index: 5, kind: input, shape index: {}]
  %s6 = inlined_call_operand.vmem [shape: bf16[2,12,16], index: 6, kind: output, shape index: {}]
  %s7 = sld [smem:[#allocation0]]
  $region34: #{tpu_custom_call.1} parent=0
    _
  %s9 = ssub.s32 1, %s7
  %s10 = scalar_select 0, %s9, %s7
  // Predicated region
  $region2: #{tpu_custom_call.1} parent=0 // pred_check
    _
  $region3: #{tpu_custom_call.1} parent=0 // pred_check_branch
    %12 = sbr.rel (0) target = $region5
  $region4: #{tpu_custom_call.1} parent=0 // pred_region
    _
  $region5: #{tpu_custom_call.1} parent=0 // pred_fallthru
    _
  // Predicated region
  $region6: #{tpu_custom_call.1} parent=0 // pred_check
    _
  $region7: #{tpu_custom_call.1} parent=0 // pred_check_branch
    %14 = sbr.rel (0) target = $region9
  $region8: #{tpu_custom_call.1} parent=0 // pred_region
    _
  $region9: #{tpu_custom_call.1} parent=0 // pred_fallthru
    _
  // Predicated region
  $region10: #{tpu_custom_call.1} parent=0 // pred_check
    _
  $region11: #{tpu_custom_call.1} parent=0 // pred_check_branch
    %16 = sbr.rel (0) target = $region13
  $region12: #{tpu_custom_call.1} parent=0 // pred_region
    _
  $region13: #{tpu_custom_call.1} parent=0 // pred_fallthru
    _
  // Predicated region
  $region14: #{tpu_custom_call.1} parent=0 // pred_check
    _
  $region15: #{tpu_custom_call.1} parent=0 // pred_check_branch
    %18 = sbr.rel (0) target = $region17
  $region16: #{tpu_custom_call.1} parent=0 // pred_region
    _
  $region17: #{tpu_custom_call.1} parent=0 // pred_fallthru
    _
  // Predicated region
  $region18: #{tpu_custom_call.1} parent=0 // pred_check
    _
  $region19: #{tpu_custom_call.1} parent=0 // pred_check_branch
    %20 = sbr.rel (0) target = $region21
  $region20: #{tpu_custom_call.1} parent=0 // pred_region
    _
  $region21: #{tpu_custom_call.1} parent=0 // pred_fallthru
    _
  // Predicated region
  $region22: #{tpu_custom_call.1} parent=0 // pred_check
    _
  $region23: #{tpu_custom_call.1} parent=0 // pred_check_branch
    %22 = sbr.rel (0) target = $region25
  $region24: #{tpu_custom_call.1} parent=0 // pred_region
    _
  $region25: #{tpu_custom_call.1} parent=0 // pred_fallthru
    _
  %v24 = vld [vmem:[%s1] sm:$0xf]
  %v25 = vld [vmem:[%s1 + $0x4] sm:$0xf]
  %v26 = vld [vmem:[%s1 + $0x8] sm:$0xf]
  %v27 = vld [vmem:[%s1 + $0xc] sm:$0x3]
  %v28 = vld [vmem:[%s4] sm:$0xf]
  %v29 = vld [vmem:[%s4 + $0x4] sm:$0x3]
  %v30 = vld [vmem:[%s2] sm:$0xff]
  %v31 = vld [vmem:[%s2 + $0x8] sm:$0xff]
  %v32 = vld [vmem:[%s3] sm:$0xff]
  %v33 = vld [vmem:[%s3 + $0x8] sm:$0xf]
  %v34 = vld [vmem:[%s5] sm:$0xff]
  %v35 = vld [vmem:[%s5 + $0x8] sm:$0xf]
  %v36 = vld [vmem:[%s0] sm:$0x3]
  %v41 = vunpack.c.l.b16 %v24
  %v42 = vunpack.c.l.b16 %v25
  %v43 = vunpack.c.l.b16 %v26
  %v44 = vunpack.c.l.b16 %v27
  %v45 = vpack.c.b16 %v42, %v41
  %v46 = vpack.c.b16 %v44, %v43
  %vm47 = vcmask 31744
  %v49 = vsel %vm47, %v45, 0
  %v52 = vsel %vm47, %v46, 0
  %vm54 = vcmask 1041408
  %v56 = vsel %vm54, %v36, 0
  %58 = vmatprep.subr.bf16.mxu0 0
  %59 = vmatpush1.bf16.msra.mxu0 %v56
  %60 = vmatprep.subr.bf16.mxu0 0
  %61 = vmatpush1.bf16.msra.mxu0 0
  %62 = vmatprep.subr.bf16.mxu0 0
  %63 = vmatpush1.bf16.msra.mxu0 0
  %64 = vmatprep.subr.bf16.mxu0 0
  %65 = vmatpush1.bf16.msra.mxu0 0
  %66 = vmatprep.subr.bf16.mxu0 0
  %67 = vmatpush1.bf16.msra.mxu0 0
  %68 = vmatprep.subr.bf16.mxu0 0
  %69 = vmatpush1.bf16.msra.mxu0 0
  %70 = vmatprep.subr.bf16.mxu0 0
  %71 = vmatpush1.bf16.msra.mxu0 0
  %72 = vmatprep.subr.bf16.mxu0 0
  %73 = vmatpush1.bf16.msra.mxu0 0
  %74 = vmatprep.subr.bf16.mxu0 0
  %75 = vmatpush1.bf16.msra.mxu0 0
  %76 = vmatprep.subr.bf16.mxu0 0
  %77 = vmatpush1.bf16.msra.mxu0 0
  %78 = vmatprep.subr.bf16.mxu0 0
  %79 = vmatpush1.bf16.msra.mxu0 0
  %80 = vmatprep.subr.bf16.mxu0 0
  %81 = vmatpush1.bf16.msra.mxu0 0
  %82 = vmatprep.subr.bf16.mxu0 0
  %83 = vmatpush1.bf16.msra.mxu0 0
  %84 = vmatprep.subr.bf16.mxu0 0
  %85 = vmatpush1.bf16.msra.mxu0 0
  %86 = vmatprep.subr.bf16.mxu0 0
  %87 = vmatpush1.bf16.msra.mxu0 0
  %88 = vmatprep.subr.bf16.mxu0 0
  %89 = vmatpush1.bf16.msra.mxu0 0
  %90 = vmatprep.mubr.bf16.mxu0 0
  %91 = vmatmul.mubr.bf16.gmra.mrb[0].mxu0 %v49
  %v92 = vpop.f32.mrb[0].mxu0
  %v93 = vadd.f32 0.0, %v92
  %v94 = vpop.f32.mrb[0].mxu0
  %v95 = vpop.f32.mrb[0].mxu0
  %v96 = vadd.f32 0.0, %v95
  %v97 = vpop.f32.mrb[0].mxu0
  %98 = vmatprep.mubr.bf16.mxu0 0
  %99 = vmatmul.mubr.bf16.gmra.mrb[0].mxu0 %v52
  %v100 = vpop.f32.mrb[0].mxu0
  %v101 = vadd.f32 0.0, %v100
  %v102 = vpop.f32.mrb[0].mxu0
  %v103 = vpop.f32.mrb[0].mxu0
  %v104 = vadd.f32 0.0, %v103
  %v105 = vpop.f32.mrb[0].mxu0
  %106 = vdwg.mxu0
  %108 = vset.pattern.permute.xlu0 0
  %109 = vperm.xlu0 %108, %v30
  %v110 = vpop.permute.xlu0 %109
  %113 = vset.pattern.permute.xlu0 0
  %114 = vperm.xlu0 %113, %v31
  %v115 = vpop.permute.xlu0 %114
  %v117 = vadd.f32 %v93, %v110
  %v118 = vadd.f32 %v96, %v115
  %v119 = vmax.f32 %v117, 0.0
  %v120 = vmax.f32 %v118, 0.0
  %122 = vset.pattern.permute.xlu0 0
  %123 = vperm.xlu0 %122, %v32
  %v124 = vpop.permute.xlu0 %123
  %127 = vset.pattern.permute.xlu0 0
  %128 = vperm.xlu0 %127, %v33
  %v129 = vpop.permute.xlu0 %128
  %v131 = vadd.f32 %v101, %v124
  %v132 = vadd.f32 %v104, %v129
  %v133 = vpack.c.bf16 %v120, %v119
  %135 = vset.pattern.permute.xlu0 0
  %136 = vperm.xlu0 %135, %v34
  %v137 = vpop.permute.xlu0 %136
  %140 = vset.pattern.permute.xlu0 0
  %141 = vperm.xlu0 %140, %v35
  %v142 = vpop.permute.xlu0 %141
  %v146 = vunpack.c.l.b16 %v28
  %v147 = vunpack.c.l.b16 %v29
  %v148 = vpack.c.b16 %v147, %v146
  %vm149 = vcmask 130048
  %v151 = vsel %vm149, %v148, 0
  %153 = vmatprep.subr.bf16.mxu0 0
  %154 = vmatpush1.bf16.msra.mxu0 %v133
  %155 = vmatprep.subr.bf16.mxu0 0
  %156 = vmatpush1.bf16.msra.mxu0 0
  %157 = vmatprep.subr.bf16.mxu0 0
  %158 = vmatpush1.bf16.msra.mxu0 0
  %159 = vmatprep.subr.bf16.mxu0 0
  %160 = vmatpush1.bf16.msra.mxu0 0
  %161 = vmatprep.subr.bf16.mxu0 0
  %162 = vmatpush1.bf16.msra.mxu0 0
  %163 = vmatprep.subr.bf16.mxu0 0
  %164 = vmatpush1.bf16.msra.mxu0 0
  %165 = vmatprep.subr.bf16.mxu0 0
  %166 = vmatpush1.bf16.msra.mxu0 0
  %167 = vmatprep.subr.bf16.mxu0 0
  %168 = vmatpush1.bf16.msra.mxu0 0
  %169 = vmatprep.subr.bf16.mxu0 0
  %170 = vmatpush1.bf16.msra.mxu0 0
  %171 = vmatprep.subr.bf16.mxu0 0
  %172 = vmatpush1.bf16.msra.mxu0 0
  %173 = vmatprep.subr.bf16.mxu0 0
  %174 = vmatpush1.bf16.msra.mxu0 0
  %175 = vmatprep.subr.bf16.mxu0 0
  %176 = vmatpush1.bf16.msra.mxu0 0
  %177 = vmatprep.subr.bf16.mxu0 0
  %178 = vmatpush1.bf16.msra.mxu0 0
  %179 = vmatprep.subr.bf16.mxu0 0
  %180 = vmatpush1.bf16.msra.mxu0 0
  %181 = vmatprep.subr.bf16.mxu0 0
  %182 = vmatpush1.bf16.msra.mxu0 0
  %183 = vmatprep.subr.bf16.mxu0 0
  %184 = vmatpush1.bf16.msra.mxu0 0
  %185 = vmatprep.mubr.bf16.mxu0 0
  %186 = vmatmul.mubr.bf16.gmra.mrb[0].mxu0 %v151
  %v187 = vpop.f32.mrb[0].mxu0
  %v188 = vadd.f32 %v137, %v187
  %v189 = vpop.f32.mrb[0].mxu0
  %v190 = vpop.f32.mrb[0].mxu0
  %v191 = vadd.f32 %v142, %v190
  %v192 = vpop.f32.mrb[0].mxu0
  %193 = vdwg.mxu0
  %v194 = vmax.f32 %v188, 0.0
  %v195 = vmax.f32 %v191, 0.0
  %v196 = vadd.f32 %v194, %v131
  %v197 = vadd.f32 %v195, %v132
  %v198 = vmax.f32 %v196, 0.0
  %v199 = vmax.f32 %v197, 0.0
  %v200 = vpack.c.bf16 %v199, %v198
  %v202 = vunpack.c.l.b16 %v200
  %v203 = vunpack.c.h.b16 %v200
  %v204 = vpack.c.b16 %v202, %v202
  %v205 = vpack.c.b16 %v203, %v203
  %vm208 = vcmask 125952
  %209 = vst.msk [vmem:[%s6] sm:$0xf] %vm208, %v204
  %vm210 = vcmask 123904
  %211 = vst.msk [vmem:[%s6 + $0x4] sm:$0x3] %vm210, %v205
  %s212 = scalar_lea.vmem %s0, 2
  %v213 = vld [vmem:[%s212] sm:$0x3]
  %v215 = vsel %vm54, %v213, 0
  %217 = vmatprep.subr.bf16.mxu0 0
  %218 = vmatpush1.bf16.msra.mxu0 %v215
  %219 = vmatprep.subr.bf16.mxu0 0
  %220 = vmatpush1.bf16.msra.mxu0 0
  %221 = vmatprep.subr.bf16.mxu0 0
  %222 = vmatpush1.bf16.msra.mxu0 0
  %223 = vmatprep.subr.bf16.mxu0 0
  %224 = vmatpush1.bf16.msra.mxu0 0
  %225 = vmatprep.subr.bf16.mxu0 0
  %226 = vmatpush1.bf16.msra.mxu0 0
  %227 = vmatprep.subr.bf16.mxu0 0
  %228 = vmatpush1.bf16.msra.mxu0 0
  %229 = vmatprep.subr.bf16.mxu0 0
  %230 = vmatpush1.bf16.msra.mxu0 0
  %231 = vmatprep.subr.bf16.mxu0 0
  %232 = vmatpush1.bf16.msra.mxu0 0
  %233 = vmatprep.subr.bf16.mxu0 0
  %234 = vmatpush1.bf16.msra.mxu0 0
  %235 = vmatprep.subr.bf16.mxu0 0
  %236 = vmatpush1.bf16.msra.mxu0 0
  %237 = vmatprep.subr.bf16.mxu0 0
  %238 = vmatpush1.bf16.msra.mxu0 0
  %239 = vmatprep.subr.bf16.mxu0 0
  %240 = vmatpush1.bf16.msra.mxu0 0
  %241 = vmatprep.subr.bf16.mxu0 0
  %242 = vmatpush1.bf16.msra.mxu0 0
  %243 = vmatprep.subr.bf16.mxu0 0
  %244 = vmatpush1.bf16.msra.mxu0 0
  %245 = vmatprep.subr.bf16.mxu0 0
  %246 = vmatpush1.bf16.msra.mxu0 0
  %247 = vmatprep.subr.bf16.mxu0 0
  %248 = vmatpush1.bf16.msra.mxu0 0
  %249 = vmatprep.mubr.bf16.mxu0 0
  %250 = vmatmul.mubr.bf16.gmra.mrb[0].mxu0 %v49
  %v251 = vpop.f32.mrb[0].mxu0
  %v252 = vadd.f32 0.0, %v251
  %v253 = vpop.f32.mrb[0].mxu0
  %v254 = vpop.f32.mrb[0].mxu0
  %v255 = vadd.f32 0.0, %v254
  %v256 = vpop.f32.mrb[0].mxu0
  %257 = vmatprep.mubr.bf16.mxu0 0
  %258 = vmatmul.mubr.bf16.gmra.mrb[0].mxu0 %v52
  %v259 = vpop.f32.mrb[0].mxu0
  %v260 = vadd.f32 0.0, %v259
  %v261 = vpop.f32.mrb[0].mxu0
  %v262 = vpop.f32.mrb[0].mxu0
  %v263 = vadd.f32 0.0, %v262
  %v264 = vpop.f32.mrb[0].mxu0
  %265 = vdwg.mxu0
  %v266 = vadd.f32 %v252, %v110
  %v267 = vadd.f32 %v255, %v115
  %v268 = vmax.f32 %v266, 0.0
  %v269 = vmax.f32 %v267, 0.0
  %v270 = vadd.f32 %v260, %v124
  %v271 = vadd.f32 %v263, %v129
  %v272 = vpack.c.bf16 %v269, %v268
  %273 = vmatprep.subr.bf16.mxu0 0
  %274 = vmatpush1.bf16.msra.mxu0 %v272
  %275 = vmatprep.subr.bf16.mxu0 0
  %276 = vmatpush1.bf16.msra.mxu0 0
  %277 = vmatprep.subr.bf16.mxu0 0
  %278 = vmatpush1.bf16.msra.mxu0 0
  %279 = vmatprep.subr.bf16.mxu0 0
  %280 = vmatpush1.bf16.msra.mxu0 0
  %281 = vmatprep.subr.bf16.mxu0 0
  %282 = vmatpush1.bf16.msra.mxu0 0
  %283 = vmatprep.subr.bf16.mxu0 0
  %284 = vmatpush1.bf16.msra.mxu0 0
  %285 = vmatprep.subr.bf16.mxu0 0
  %286 = vmatpush1.bf16.msra.mxu0 0
  %287 = vmatprep.subr.bf16.mxu0 0
  %288 = vmatpush1.bf16.msra.mxu0 0
  %289 = vmatprep.subr.bf16.mxu0 0
  %290 = vmatpush1.bf16.msra.mxu0 0
  %291 = vmatprep.subr.bf16.mxu0 0
  %292 = vmatpush1.bf16.msra.mxu0 0
  %293 = vmatprep.subr.bf16.mxu0 0
  %294 = vmatpush1.bf16.msra.mxu0 0
  %295 = vmatprep.subr.bf16.mxu0 0
  %296 = vmatpush1.bf16.msra.mxu0 0
  %297 = vmatprep.subr.bf16.mxu0 0
  %298 = vmatpush1.bf16.msra.mxu0 0
  %299 = vmatprep.subr.bf16.mxu0 0
  %300 = vmatpush1.bf16.msra.mxu0 0
  %301 = vmatprep.subr.bf16.mxu0 0
  %302 = vmatpush1.bf16.msra.mxu0 0
  %303 = vmatprep.subr.bf16.mxu0 0
  %304 = vmatpush1.bf16.msra.mxu0 0
  %305 = vmatprep.mubr.bf16.mxu0 0
  %306 = vmatmul.mubr.bf16.gmra.mrb[0].mxu0 %v151
  %v307 = vpop.f32.mrb[0].mxu0
  %v308 = vadd.f32 %v137, %v307
  %v309 = vpop.f32.mrb[0].mxu0
  %v310 = vpop.f32.mrb[0].mxu0
  %v311 = vadd.f32 %v142, %v310
  %v312 = vpop.f32.mrb[0].mxu0
  %313 = vdwg.mxu0
  %v314 = vmax.f32 %v308, 0.0
  %v315 = vmax.f32 %v311, 0.0
  %v316 = vadd.f32 %v314, %v270
  %v317 = vadd.f32 %v315, %v271
  %v318 = vmax.f32 %v316, 0.0
  %v319 = vmax.f32 %v317, 0.0
  %v320 = vpack.c.bf16 %v319, %v318
  %v322 = vunpack.c.l.b16 %v320
  %v323 = vunpack.c.h.b16 %v320
  %v324 = vpack.c.b16 %v322, %v322
  %v325 = vpack.c.b16 %v323, %v323
  %s328 = scalar_lea.vmem %s6, 8
  %329 = vst.msk [vmem:[%s328] sm:$0xf] %vm208, %v324
  %330 = vst.msk [vmem:[%s328 + $0x4] sm:$0x3] %vm210, %v325
  // Predicated region
  $region26: #{tpu_custom_call.1} parent=0 // pred_check
    _
  $region27: #{tpu_custom_call.1} parent=0 // pred_check_branch
    %332 = sbr.rel (0) target = $region29
  $region28: #{tpu_custom_call.1} parent=0 // pred_region
    _
  $region29: #{tpu_custom_call.1} parent=0 // pred_fallthru
    _
  // Predicated region
  $region30: #{tpu_custom_call.1} parent=0 // pred_check
    _
  $region31: #{tpu_custom_call.1} parent=0 // pred_check_branch
    %334 = sbr.rel (0) target = $region33
  $region32: #{tpu_custom_call.1} parent=0 // pred_region
    _
  $region33: #{tpu_custom_call.1} parent=0 // pred_fallthru
    _

</llo_original>
